<compile_context>
chip_gen: v7x
topology: tpu7x:2x2x1
jax: 0.10.0
libtpu: 0.0.40
codegen_flags: <defaults>
</compile_context>

<pallas_src>
import jax
import jax.numpy as jnp
from jax.experimental import pallas as pl
from jax.experimental.pallas import tpu as pltpu

IN_FEATURES = 4
OUT_FEATURES = 3
LANE = 128
MAX_TILE_N = 128 * 1024   # lanes (samples) per grid step; 16 MiB double-buffered


def _round_up(a: int, b: int) -> int:
    return ((a + b - 1) // b) * b


def _cdiv(a: int, b: int) -> int:
    return (a + b - 1) // b


def _choose_tiling(n: int):
    """Adaptive batch tiling: biggest 128-aligned tile <= MAX_TILE_N with less
    than 128 lanes of padding per tile (feedback items 2/3/7)."""
    n_lane = _round_up(max(n, 1), LANE)
    num_tiles = _cdiv(n_lane, MAX_TILE_N)
    tile_n = _round_up(_cdiv(n_lane, num_tiles), LANE)
    return tile_n, tile_n * num_tiles


def linear_kernel(w_ref, b_ref, x_ref, o_ref):
    # w_ref: VMEM (3, 4)  PyTorch weight layout (out_features, in_features)
    # b_ref: VMEM (3, 1)
    # x_ref: VMEM (4, T)  feature-major activations, batch on the lane axis
    # o_ref: VMEM (3, T)
    x = x_ref[...]
    w = w_ref[...]
    # Full-vreg accumulation: each term is a (1,T) x (3,1) -> (3,T) broadcast
    # FMA (the tiny (3,1) weight-column broadcasts are loop-invariant and
    # hoisted), with the bias folded into the first term.
    y = b_ref[...] + x[0:1, :] * w[:, 0:1]
    for k in range(1, IN_FEATURES):          # unrolled at trace time
        y = y + x[k:k + 1, :] * w[:, k:k + 1]
    # Single lane-dense, unmasked store of the whole (3, T) tile.
    o_ref[...] = y.astype(o_ref.dtype)


def _linear_fm_padded(x_fm, weight, bias_col, tile_n):
    """x_fm: (4, n_pad) with n_pad % tile_n == 0  ->  (3, n_pad)."""
    n_pad = x_fm.shape[1]
    grid = (n_pad // tile_n,)
    return pl.pallas_call(
        linear_kernel,
        out_shape=jax.ShapeDtypeStruct((OUT_FEATURES, n_pad), x_fm.dtype),
        grid_spec=pl.GridSpec(
            grid=grid,
            in_specs=[
                # Tiny weight/bias stay resident in VMEM (constant block index).
                pl.BlockSpec((OUT_FEATURES, IN_FEATURES), lambda i: (0, 0)),
                pl.BlockSpec((OUT_FEATURES, 1), lambda i: (0, 0)),
                # Activations tile along the batch/lane axis; features full-extent.
                pl.BlockSpec((IN_FEATURES, tile_n), lambda i: (0, i)),
            ],
            out_specs=pl.BlockSpec((OUT_FEATURES, tile_n), lambda i: (0, i)),
        ),
        compiler_params=pltpu.CompilerParams(
            dimension_semantics=("parallel",),      # megacore-shardable on v7x
            # 2 bufs * (8-sublane-padded x + out) = 128 B/lane -> ~16 MiB at 128K
            # lanes; 40 MiB raises v5e/v6e defaults and stays under the v7x cap.
            vmem_limit_bytes=40 * 1024 * 1024,
        ),
        cost_estimate=pl.CostEstimate(
            flops=2 * n_pad * IN_FEATURES * OUT_FEATURES,
            transcendentals=0,
            bytes_accessed=4 * (n_pad * (IN_FEATURES + OUT_FEATURES)
                                + IN_FEATURES * OUT_FEATURES + OUT_FEATURES),
        ),
    )(weight, bias_col, x_fm)


def _linear_feature_major(x_fm, weight, bias):
    """Copy-free performance path: x_fm (4, N) -> (3, N)."""
    n = x_fm.shape[1]
    tile_n, n_pad = _choose_tiling(n)
    if n_pad != n:                     # < 128 lanes of padding per tile
        x_fm = jnp.pad(x_fm, ((0, 0), (0, n_pad - n)))
    out = _linear_fm_padded(x_fm, weight, bias.reshape(OUT_FEATURES, 1), tile_n)
    return out if n_pad == n else out[:, :n]


linear_feature_major = jax.jit(_linear_feature_major)


@jax.jit
def softmax_classifier_forward(x, weight, bias):
    """PyTorch-layout interface (matches nn.Linear(4,3)): x (N, 4) -> (N, 3).

    The two transposes are interface adapters only; pipelines that can keep
    activations feature-major should call `linear_feature_major` directly.
    """
    return jnp.transpose(_linear_feature_major(jnp.transpose(x), weight, bias))


if __name__ == "__main__":
    key = jax.random.PRNGKey(0)
    kx, kw, kb, kx2, kx3 = jax.random.split(key, 5)

    # Deterministic parameters matching nn.Linear(4, 3) shapes:
    #   weight: (out_features, in_features) = (3, 4), bias: (3,)
    bound = 1.0 / (IN_FEATURES ** 0.5)
    weight = jax.random.uniform(kw, (OUT_FEATURES, IN_FEATURES),
                                dtype=jnp.float32, minval=-bound, maxval=bound)
    bias = jax.random.uniform(kb, (OUT_FEATURES,),
                              dtype=jnp.float32, minval=-bound, maxval=bound)

    # 1) PyTorch-layout path, small batch (N, 4).
    x = jax.random.normal(kx, (8, IN_FEATURES), dtype=jnp.float32)
    out = jax.block_until_ready(softmax_classifier_forward(x, weight, bias))
    ref = x @ weight.T + bias
    assert out.shape == (8, OUT_FEATURES)
    assert jnp.allclose(out, ref, atol=1e-5, rtol=1e-5)

    # 2) Ragged batch exercises the pad / slice-off path.
    x2 = jax.random.normal(kx2, (200, IN_FEATURES), dtype=jnp.float32)
    out2 = jax.block_until_ready(softmax_classifier_forward(x2, weight, bias))
    ref2 = x2 @ weight.T + bias
    assert out2.shape == (200, OUT_FEATURES)
    assert jnp.allclose(out2, ref2, atol=1e-5, rtol=1e-5)

    # 3) Copy-free feature-major path (4, N) -> (3, N).
    x_fm = jax.random.normal(kx3, (IN_FEATURES, 256), dtype=jnp.float32)
    out_fm = jax.block_until_ready(linear_feature_major(x_fm, weight, bias))
    ref_fm = weight @ x_fm + bias[:, None]
    assert out_fm.shape == (OUT_FEATURES, 256)
    assert jnp.allclose(out_fm, ref_fm, atol=1e-5, rtol=1e-5)

    print("KERNEL_OK")
</pallas_src>

<mosaic_0001>
module attributes {stable_mosaic.version = 11 : i64} {
  func.func @linear_kernel(%arg0: i32, %arg1: memref<3x4xf32, #tpu.memory_space<vmem>>, %arg2: memref<3x1xf32, #tpu.memory_space<vmem>>, %arg3: memref<4x128xf32, #tpu.memory_space<vmem>>, %arg4: memref<3x128xf32, #tpu.memory_space<vmem>>) attributes {dimension_semantics = [#tpu.dimension_semantics<parallel>], iteration_bounds = array<i64: 1>, scalar_prefetch = 0 : i64, scratch_operands = 0 : i64, tpu.core_type = #tpu.core_type<tc>, window_params = [{pipeline_mode = #tpu.pipeline_mode<synchronous>, transform_indices = @transform_0, window_bounds = array<i64: 3, 4>}, {pipeline_mode = #tpu.pipeline_mode<synchronous>, transform_indices = @transform_1, window_bounds = array<i64: 3, 1>}, {transform_indices = @transform_2, window_bounds = array<i64: 4, 128>}, {transform_indices = @transform_3, window_bounds = array<i64: 3, 128>}]} {
    %c0 = arith.constant 0 : index
    %c0_0 = arith.constant 0 : index
    %0 = vector.load %arg3[%c0, %c0_0] : memref<4x128xf32, #tpu.memory_space<vmem>>, vector<4x128xf32>
    %c0_1 = arith.constant 0 : index
    %c0_2 = arith.constant 0 : index
    %1 = vector.load %arg1[%c0_1, %c0_2] : memref<3x4xf32, #tpu.memory_space<vmem>>, vector<3x4xf32>
    %c0_3 = arith.constant 0 : index
    %c0_4 = arith.constant 0 : index
    %2 = vector.load %arg2[%c0_3, %c0_4] : memref<3x1xf32, #tpu.memory_space<vmem>>, vector<3x1xf32>
    %3 = vector.extract_strided_slice %0 {offsets = [0, 0], sizes = [1, 128], strides = [1, 1]} : vector<4x128xf32> to vector<1x128xf32>
    %4 = vector.extract_strided_slice %1 {offsets = [0, 0], sizes = [3, 1], strides = [1, 1]} : vector<3x4xf32> to vector<3x1xf32>
    %5 = vector.broadcast %3 : vector<1x128xf32> to vector<3x128xf32>
    %6 = vector.broadcast %4 : vector<3x1xf32> to vector<3x128xf32>
    %7 = arith.mulf %5, %6 : vector<3x128xf32>
    %8 = vector.broadcast %2 : vector<3x1xf32> to vector<3x128xf32>
    %9 = arith.addf %8, %7 : vector<3x128xf32>
    %10 = vector.extract_strided_slice %0 {offsets = [1, 0], sizes = [1, 128], strides = [1, 1]} : vector<4x128xf32> to vector<1x128xf32>
    %11 = vector.extract_strided_slice %1 {offsets = [0, 1], sizes = [3, 1], strides = [1, 1]} : vector<3x4xf32> to vector<3x1xf32>
    %12 = vector.broadcast %10 : vector<1x128xf32> to vector<3x128xf32>
    %13 = vector.broadcast %11 : vector<3x1xf32> to vector<3x128xf32>
    %14 = arith.mulf %12, %13 : vector<3x128xf32>
    %15 = arith.addf %9, %14 : vector<3x128xf32>
    %16 = vector.extract_strided_slice %0 {offsets = [2, 0], sizes = [1, 128], strides = [1, 1]} : vector<4x128xf32> to vector<1x128xf32>
    %17 = vector.extract_strided_slice %1 {offsets = [0, 2], sizes = [3, 1], strides = [1, 1]} : vector<3x4xf32> to vector<3x1xf32>
    %18 = vector.broadcast %16 : vector<1x128xf32> to vector<3x128xf32>
    %19 = vector.broadcast %17 : vector<3x1xf32> to vector<3x128xf32>
    %20 = arith.mulf %18, %19 : vector<3x128xf32>
    %21 = arith.addf %15, %20 : vector<3x128xf32>
    %22 = vector.extract_strided_slice %0 {offsets = [3, 0], sizes = [1, 128], strides = [1, 1]} : vector<4x128xf32> to vector<1x128xf32>
    %23 = vector.extract_strided_slice %1 {offsets = [0, 3], sizes = [3, 1], strides = [1, 1]} : vector<3x4xf32> to vector<3x1xf32>
    %24 = vector.broadcast %22 : vector<1x128xf32> to vector<3x128xf32>
    %25 = vector.broadcast %23 : vector<3x1xf32> to vector<3x128xf32>
    %26 = arith.mulf %24, %25 : vector<3x128xf32>
    %27 = arith.addf %21, %26 : vector<3x128xf32>
    %c0_5 = arith.constant 0 : index
    %c0_6 = arith.constant 0 : index
    %28 = vector.load %arg4[%c0_5, %c0_6] : memref<3x128xf32, #tpu.memory_space<vmem>>, vector<3x128xf32>
    tpu.vector_store %arg4[%c0_5, %c0_6], %27 {strides = array<i32>} : memref<3x128xf32, #tpu.memory_space<vmem>>, vector<3x128xf32>,
    return
  }
  func.func @transform_0(%arg0: i32) -> (i32, i32) {
    %c0_i32 = arith.constant 0 : i32
    %c0_i32_0 = arith.constant 0 : i32
    %c0_i32_1 = arith.constant 0 : i32
    return %c0_i32, %c0_i32_0 : i32, i32
  }
  func.func @transform_1(%arg0: i32) -> (i32, i32) {
    %c0_i32 = arith.constant 0 : i32
    %c0_i32_0 = arith.constant 0 : i32
    %c0_i32_1 = arith.constant 0 : i32
    return %c0_i32, %c0_i32_0 : i32, i32
  }
  func.func @transform_2(%arg0: i32) -> (i32, i32) {
    %c0_i32 = arith.constant 0 : i32
    %c0_i32_0 = arith.constant 0 : i32
    return %c0_i32, %arg0 : i32, i32
  }
  func.func @transform_3(%arg0: i32) -> (i32, i32) {
    %c0_i32 = arith.constant 0 : i32
    %c0_i32_0 = arith.constant 0 : i32
    return %c0_i32, %arg0 : i32, i32
  }
}

</mosaic_0001>

<llo_original>
// kernel: softmax_classifier_forward.1
$region0: #{softmax_classifier_forward.1}
  #allocation0 [shape = 'u32[]', space=smem, size = 0x4, offset = 0x4, fixed_abs, tag = 'smem constant byte address 0x4 - core index']
  #allocation1 [shape = 'u32[144,128]{1,0:T(1,128)}', space=vmem, size = 0x12000, scoped, tag = 'internal scratch']
  %s0 = inlined_call_operand.vmem [shape: f32[3,4], index: 0, kind: input, shape index: {}]
  %s1 = inlined_call_operand.vmem [shape: f32[3,1], index: 1, kind: input, shape index: {}]
  %s2 = inlined_call_operand.vmem [shape: f32[4,128], index: 2, kind: input, shape index: {}]
  %s3 = inlined_call_operand.vmem [shape: f32[3,128], index: 3, kind: output, shape index: {}]
  %s4 = sld [smem:[#allocation0]]
  $region22: #{softmax_classifier_forward.1} parent=0
    _
  %s6 = ssub.s32 1, %s4
  %s7 = scalar_select 0, %s6, %s4
  // Predicated region
  $region2: #{softmax_classifier_forward.1} parent=0 // pred_check
    _
  $region3: #{softmax_classifier_forward.1} parent=0 // pred_check_branch
    %9 = sbr.rel (0) target = $region5
  $region4: #{softmax_classifier_forward.1} parent=0 // pred_region
    _
  $region5: #{softmax_classifier_forward.1} parent=0 // pred_fallthru
    _
  // Predicated region
  $region6: #{softmax_classifier_forward.1} parent=0 // pred_check
    _
  $region7: #{softmax_classifier_forward.1} parent=0 // pred_check_branch
    %11 = sbr.rel (0) target = $region9
  $region8: #{softmax_classifier_forward.1} parent=0 // pred_region
    _
  $region9: #{softmax_classifier_forward.1} parent=0 // pred_fallthru
    _
  // Predicated region
  $region10: #{softmax_classifier_forward.1} parent=0 // pred_check
    _
  $region11: #{softmax_classifier_forward.1} parent=0 // pred_check_branch
    %13 = sbr.rel (0) target = $region13
  $region12: #{softmax_classifier_forward.1} parent=0 // pred_region
    _
  $region13: #{softmax_classifier_forward.1} parent=0 // pred_fallthru
    _
  %v14 = vld [vmem:[%s2] sm:$0xf]
  %v15 = vld [vmem:[%s0] sm:$0x7]
  %v16 = vld [vmem:[%s1] sm:$0x7]
  %v17 = vlaneseq
  %v18 = vshrl.u32 %v17, 7
  %v19 = vsub.s32 0, %v18
  %v20 = vrot.slane %v14, %v19
  %22 = vset.pattern.permute.xlu0 0
  %23 = vperm.xlu0 %22, %v15
  %v24 = vpop.permute.xlu0 %23
  %v26 = vmul.f32 %v20, %v24
  %28 = vset.pattern.permute.xlu0 0
  %29 = vperm.xlu0 %28, %v16
  %v30 = vpop.permute.xlu0 %29
  %v32 = vadd.f32 %v30, %v26
  %v33 = vlaneseq
  %v34 = vshrl.u32 %v33, 7
  %v35 = vsub.s32 1, %v34
  %v36 = vrot.slane %v14, %v35
  %37 = vset.pattern.permute.xlu0 1
  %38 = vperm.xlu0 %37, %v15
  %v39 = vpop.permute.xlu0 %38
  %v41 = vmul.f32 %v36, %v39
  %v42 = vadd.f32 %v32, %v41
  %v43 = vlaneseq
  %v44 = vshrl.u32 %v43, 7
  %v45 = vsub.s32 2, %v44
  %v46 = vrot.slane %v14, %v45
  %47 = vset.pattern.permute.xlu0 2
  %48 = vperm.xlu0 %47, %v15
  %v49 = vpop.permute.xlu0 %48
  %v51 = vmul.f32 %v46, %v49
  %v52 = vadd.f32 %v42, %v51
  %v53 = vlaneseq
  %v54 = vshrl.u32 %v53, 7
  %v55 = vsub.s32 3, %v54
  %v56 = vrot.slane %v14, %v55
  %57 = vset.pattern.permute.xlu0 3
  %58 = vperm.xlu0 %57, %v15
  %v59 = vpop.permute.xlu0 %58
  %v61 = vmul.f32 %v56, %v59
  %v62 = vadd.f32 %v52, %v61
  %63 = vst [vmem:[%s3] sm:$0x7] %v62
  // Predicated region
  $region14: #{softmax_classifier_forward.1} parent=0 // pred_check
    _
  $region15: #{softmax_classifier_forward.1} parent=0 // pred_check_branch
    %65 = sbr.rel (0) target = $region17
  $region16: #{softmax_classifier_forward.1} parent=0 // pred_region
    _
  $region17: #{softmax_classifier_forward.1} parent=0 // pred_fallthru
    _
  // Predicated region
  $region18: #{softmax_classifier_forward.1} parent=0 // pred_check
    _
  $region19: #{softmax_classifier_forward.1} parent=0 // pred_check_branch
    %67 = sbr.rel (0) target = $region21
  $region20: #{softmax_classifier_forward.1} parent=0 // pred_region
    _
  $region21: #{softmax_classifier_forward.1} parent=0 // pred_fallthru
    _

</llo_original>
